<compile_context>
chip_gen: v6e
topology: v6e:2x2x1
jax: 0.10.0
libtpu: 0.0.40
codegen_flags: <defaults>
</compile_context>

<pallas_src>
import functools

import jax
import jax.numpy as jnp
from jax.experimental import pallas as pl
from jax.experimental.pallas import tpu as pltpu

_LANES = 128
_SUBLANES = 8
_N_SUMS = 5           # [sum(focal), sum(bce), p_tp, sum(probs), sum(t)]
_PAD_LOGIT = -200.0   # exp(-200) == 0 exactly in f32 -> padded elements contribute 0


def _round_up(x, m):
    return ((x + m - 1) // m) * m


def _combined_loss_kernel(pred_ref, targ_ref, out_ref, acc_ref, *,
                          tile_rows, focal_alpha, focal_gamma):
    i = pl.program_id(1)

    @pl.when(i == 0)
    def _init():
        acc_ref[...] = jnp.zeros_like(acc_ref)

    x = pred_ref[...].astype(jnp.float32)     # (tile_rows, 128) logits
    t = targ_ref[...].astype(jnp.float32)     # (tile_rows, 128) labels in {0,1}

    # Shared exp(-|x|) feeds both the stable BCE (log1p) and the sigmoid.
    e = jnp.exp(-jnp.abs(x))
    inv_1pe = 1.0 / (1.0 + e)
    probs = jnp.where(x >= 0.0, inv_1pe, e * inv_1pe)      # == sigmoid(x)
    bce = jnp.maximum(x, 0.0) - x * t + jnp.log1p(e)       # stable BCE-with-logits

    pt = probs * t                                         # reused as the p_tp accumulator
    one_minus_pt = probs + t - 2.0 * pt                    # == 1 - pt (algebraic reuse)
    g = float(focal_gamma)
    if g.is_integer() and 0.0 <= g <= 8.0:
        gi = int(g)
        focal_w = jnp.ones_like(one_minus_pt) if gi == 0 else one_minus_pt
        for _ in range(max(gi - 1, 0)):                    # gamma=2 -> one extra mul
            focal_w = focal_w * one_minus_pt
    else:
        focal_w = one_minus_pt ** g                        # non-integer gamma fallback
    alpha_w = (1.0 - focal_alpha) + (2.0 * focal_alpha - 1.0) * t
    focal = alpha_w * focal_w * bce

    # Per-(sublane,lane) accumulation only (pure VALU adds).  Cross-lane reductions and
    # the precision/recall/F1 scalar math happen once in the JAX wrapper.
    n_groups = tile_rows // _SUBLANES

    def _acc(k, v):
        acc_ref[k] += jnp.sum(v.reshape(n_groups, _SUBLANES, _LANES), axis=0)

    _acc(0, focal)     # sum(focal)
    _acc(1, bce)       # sum(bce)
    _acc(2, pt)        # p_tp
    _acc(3, probs)     # sum(probs)   (p_tp + p_fp == sum(probs))
    _acc(4, t)         # sum(t)       (tp + fn == sum(t) for the hard threshold)

    @pl.when(i == pl.num_programs(1) - 1)
    def _finalize():
        out_ref[...] = acc_ref[...]


def combined_loss(predictions, targets, *,
                  focal_alpha=0.25, focal_gamma=2.0,
                  pf1_weight=0.3, focal_weight=0.5, bce_weight=0.2,
                  beta=1.0, eps=1e-8, max_tile_rows=1024):
    """JAX/Pallas equivalent of CombinedLoss.forward for 1-D inputs [batch_size]."""
    b = int(predictions.shape[0])

    rows_needed = max(1, -(-b // _LANES))
    max_tr = max(_SUBLANES, (int(max_tile_rows) // _SUBLANES) * _SUBLANES)
    tile_rows = min(max_tr, _round_up(rows_needed, _SUBLANES))
    num_tiles = -(-rows_needed // tile_rows)
    num_slices = 2 if num_tiles >= 2 else 1          # v7x: one slice per TensorCore
    tiles_per_slice = -(-num_tiles // num_slices)
    rows_padded = num_slices * tiles_per_slice * tile_rows
    pad = rows_padded * _LANES - b

    pred = predictions.astype(jnp.float32)
    targ = targets.astype(jnp.float32)
    if pad:
        # Sentinel padding (no in-kernel mask): exp(-|PAD|) == 0 and target 0 make every
        # padded element contribute exactly 0 to all accumulated sums.
        pred = jnp.pad(pred, (0, pad), constant_values=_PAD_LOGIT)
        targ = jnp.pad(targ, (0, pad), constant_values=0.0)
    pred = pred.reshape(rows_padded, _LANES)   # sublane-dense: full (8,128) f32 vregs
    targ = targ.reshape(rows_padded, _LANES)

    kernel = functools.partial(
        _combined_loss_kernel,
        tile_rows=int(tile_rows),
        focal_alpha=float(focal_alpha),
        focal_gamma=float(focal_gamma),
    )

    in_map = lambda c, i: (c * tiles_per_slice + i, 0)
    partials = pl.pallas_call(
        kernel,
        out_shape=jax.ShapeDtypeStruct(
            (num_slices * _N_SUMS, _SUBLANES, _LANES), jnp.float32),
        grid_spec=pltpu.PrefetchScalarGridSpec(
            num_scalar_prefetch=0,
            grid=(num_slices, tiles_per_slice),
            in_specs=[
                pl.BlockSpec((tile_rows, _LANES), in_map),
                pl.BlockSpec((tile_rows, _LANES), in_map),
            ],
            out_specs=pl.BlockSpec((_N_SUMS, _SUBLANES, _LANES),
                                   lambda c, i: (c, 0, 0)),
            scratch_shapes=[pltpu.VMEM((_N_SUMS, _SUBLANES, _LANES), jnp.float32)],
        ),
        compiler_params=pltpu.CompilerParams(
            # slice axis parallel (maps onto v7x's two TensorCores);
            # row-tile axis is the carried reduction.
            dimension_semantics=("parallel", "arbitrary")),
    )(pred, targ)

    # Tiny finalize in plain JAX: cross-slice/cross-lane reduction + F1 scalar math.
    sums = jnp.sum(partials.reshape(num_slices, _N_SUMS, _SUBLANES, _LANES),
                   axis=(0, 2, 3))
    focal_sum, bce_sum, p_tp, sum_probs, sum_t = (sums[k] for k in range(_N_SUMS))

    inv_b = 1.0 / float(b)
    p_prec = p_tp / (sum_probs + eps)          # p_tp + p_fp == sum(probs)
    p_rec = p_tp / (sum_t + eps)               # tp + fn == sum(targets)
    b2 = float(beta) * float(beta)
    p_f1 = jnp.where((p_prec + p_rec) > 0.0,
                     (1.0 + b2) * (p_prec * p_rec) / (b2 * p_prec + p_rec + eps),
                     0.0)
    return (pf1_weight * (1.0 - p_f1)
            + focal_weight * focal_sum * inv_b
            + bce_weight * bce_sum * inv_b)


def _reference_combined_loss(predictions, targets, *,
                             focal_alpha=0.25, focal_gamma=2.0,
                             pf1_weight=0.3, focal_weight=0.5, bce_weight=0.2,
                             beta=1.0, eps=1e-8):
    """Pure-JAX reference mirroring the PyTorch module (for sanity checking)."""
    x = predictions.astype(jnp.float32)
    t = targets.astype(jnp.float32)
    probs = jax.nn.sigmoid(x)
    bce = jnp.maximum(x, 0.0) - x * t + jnp.log1p(jnp.exp(-jnp.abs(x)))
    pt = probs * t + (1.0 - probs) * (1.0 - t)
    focal = (focal_alpha * t + (1 - focal_alpha) * (1 - t)) * (1 - pt) ** focal_gamma * bce
    p_tp = jnp.sum(probs * t)
    p_fp = jnp.sum(probs * (1 - t))
    tp = jnp.sum((probs > 0.5).astype(jnp.float32) * t)
    fn = jnp.sum((probs <= 0.5).astype(jnp.float32) * t)
    p_prec = p_tp / (p_tp + p_fp + eps)
    p_rec = p_tp / (tp + fn + eps)
    p_f1 = jnp.where((p_prec + p_rec) > 0,
                     (1 + beta ** 2) * p_prec * p_rec / (beta ** 2 * p_prec + p_rec + eps),
                     0.0)
    return (pf1_weight * (1.0 - p_f1)
            + focal_weight * jnp.mean(focal)
            + bce_weight * jnp.mean(bce))


if __name__ == "__main__":
    key = jax.random.PRNGKey(0)
    k1, k2, k3, k4, k5, k6 = jax.random.split(key, 6)

    # Case 1: tiny batch (module-consistent 1-D shape), single tile, sentinel-padded tail.
    b1 = 8
    pred1 = jax.random.normal(k1, (b1,), dtype=jnp.float32)               # logits [B]
    targ1 = (jax.random.uniform(k2, (b1,)) > 0.5).astype(jnp.float32)     # labels [B]
    loss1 = jax.block_until_ready(combined_loss(pred1, targ1))
    ref1 = _reference_combined_loss(pred1, targ1)
    assert jnp.allclose(loss1, ref1, atol=1e-5, rtol=1e-4), (loss1, ref1)

    # Case 2: two slices x one tile each, ragged sentinel-padded tail.
    b2 = 2000
    pred2 = jax.random.normal(k3, (b2,), dtype=jnp.float32)
    targ2 = (jax.random.uniform(k4, (b2,)) > 0.8).astype(jnp.float32)
    loss2 = jax.block_until_ready(combined_loss(pred2, targ2, max_tile_rows=8))
    ref2 = _reference_combined_loss(pred2, targ2)
    assert jnp.allclose(loss2, ref2, atol=1e-5, rtol=1e-4), (loss2, ref2)

    # Case 3: multi-tile carried accumulator per slice (last tile is pure padding).
    b3 = 5000
    pred3 = jax.random.normal(k5, (b3,), dtype=jnp.float32)
    targ3 = (jax.random.uniform(k6, (b3,)) > 0.7).astype(jnp.float32)
    loss3 = jax.block_until_ready(combined_loss(pred3, targ3, max_tile_rows=8))
    ref3 = _reference_combined_loss(pred3, targ3)
    assert jnp.allclose(loss3, ref3, atol=1e-5, rtol=1e-4), (loss3, ref3)

    print("KERNEL_OK")
</pallas_src>

<mosaic_0001>
module attributes {stable_mosaic.version = 11 : i64} {
  func.func @_combined_loss_kernel(%arg0: i32, %arg1: i32, %arg2: memref<8x128xf32, #tpu.memory_space<vmem>>, %arg3: memref<8x128xf32, #tpu.memory_space<vmem>>, %arg4: memref<5x8x128xf32, #tpu.memory_space<vmem>>, %arg5: memref<5x8x128xf32, #tpu.memory_space<vmem>>) attributes {dimension_semantics = [#tpu.dimension_semantics<parallel>, #tpu.dimension_semantics<arbitrary>], iteration_bounds = array<i64: 1, 1>, scalar_prefetch = 0 : i64, scratch_operands = 1 : i64, tpu.core_type = #tpu.core_type<tc>, window_params = [{transform_indices = @transform_0, window_bounds = array<i64: 8, 128>}, {transform_indices = @transform_1, window_bounds = array<i64: 8, 128>}, {transform_indices = @transform_2, window_bounds = array<i64: 5, 8, 128>}]} {
    %c0_i32 = arith.constant 0 : i32
    %0 = arith.cmpi eq, %arg1, %c0_i32 : i32
    %1 = arith.extui %0 : i1 to i32
    %c0_i32_0 = arith.constant 0 : i32
    %2 = arith.cmpi ne, %1, %c0_i32_0 : i32
    scf.if %2 {
      %cst_44 = arith.constant 0.000000e+00 : f32
      %78 = vector.broadcast %cst_44 : f32 to vector<5x8x128xf32>
      %c0_45 = arith.constant 0 : index
      %c0_46 = arith.constant 0 : index
      %c0_47 = arith.constant 0 : index
      %79 = vector.load %arg5[%c0_45, %c0_46, %c0_47] : memref<5x8x128xf32, #tpu.memory_space<vmem>>, vector<5x8x128xf32>
      tpu.vector_store %arg5[%c0_45, %c0_46, %c0_47], %78 {strides = array<i32>} : memref<5x8x128xf32, #tpu.memory_space<vmem>>, vector<5x8x128xf32>,
    } else {
    }
    %c0 = arith.constant 0 : index
    %c0_1 = arith.constant 0 : index
    %3 = vector.load %arg2[%c0, %c0_1] : memref<8x128xf32, #tpu.memory_space<vmem>>, vector<8x128xf32>
    %c0_2 = arith.constant 0 : index
    %c0_3 = arith.constant 0 : index
    %4 = vector.load %arg3[%c0_2, %c0_3] : memref<8x128xf32, #tpu.memory_space<vmem>>, vector<8x128xf32>
    %5 = math.absf %3 : vector<8x128xf32>
    %cst = arith.constant 0.000000e+00 : f32
    %6 = vector.broadcast %cst : f32 to vector<8x128xf32>
    %7 = arith.subf %6, %5 : vector<8x128xf32>
    %8 = math.exp %7 : vector<8x128xf32>
    %cst_4 = arith.constant 1.000000e+00 : f32
    %9 = vector.broadcast %cst_4 : f32 to vector<8x128xf32>
    %10 = arith.addf %9, %8 : vector<8x128xf32>
    %cst_5 = arith.constant 1.000000e+00 : f32
    %11 = vector.broadcast %cst_5 : f32 to vector<8x128xf32>
    %12 = arith.divf %11, %10 : vector<8x128xf32>
    %cst_6 = arith.constant 0.000000e+00 : f32
    %13 = vector.broadcast %cst_6 : f32 to vector<8x128xf32>
    %14 = arith.cmpf oge, %3, %13 : vector<8x128xf32>
    %15 = arith.mulf %8, %12 : vector<8x128xf32>
    %16 = arith.select %14, %12, %15 : vector<8x128xi1>, vector<8x128xf32>
    %cst_7 = arith.constant 0.000000e+00 : f32
    %17 = vector.broadcast %cst_7 : f32 to vector<8x128xf32>
    %18 = arith.maximumf %3, %17 : vector<8x128xf32>
    %19 = arith.mulf %3, %4 : vector<8x128xf32>
    %20 = arith.subf %18, %19 : vector<8x128xf32>
    %21 = math.log1p %8 : vector<8x128xf32>
    %22 = arith.addf %20, %21 : vector<8x128xf32>
    %23 = arith.mulf %16, %4 : vector<8x128xf32>
    %24 = arith.addf %16, %4 : vector<8x128xf32>
    %cst_8 = arith.constant 2.000000e+00 : f32
    %25 = vector.broadcast %cst_8 : f32 to vector<8x128xf32>
    %26 = arith.mulf %25, %23 : vector<8x128xf32>
    %27 = arith.subf %24, %26 : vector<8x128xf32>
    %28 = arith.mulf %27, %27 : vector<8x128xf32>
    %cst_9 = arith.constant -5.000000e-01 : f32
    %29 = vector.broadcast %cst_9 : f32 to vector<8x128xf32>
    %30 = arith.mulf %29, %4 : vector<8x128xf32>
    %cst_10 = arith.constant 7.500000e-01 : f32
    %31 = vector.broadcast %cst_10 : f32 to vector<8x128xf32>
    %32 = arith.addf %31, %30 : vector<8x128xf32>
    %33 = arith.mulf %32, %28 : vector<8x128xf32>
    %34 = arith.mulf %33, %22 : vector<8x128xf32>
    %c0_11 = arith.constant 0 : index
    %c0_12 = arith.constant 0 : index
    %c0_13 = arith.constant 0 : index
    %35 = vector.load %arg5[%c0_11, %c0_12, %c0_13] : memref<5x8x128xf32, #tpu.memory_space<vmem>>, vector<1x8x128xf32>
    %36 = vector.shape_cast %35 : vector<1x8x128xf32> to vector<8x128xf32>
    %37 = vector.shape_cast %34 : vector<8x128xf32> to vector<1x8x128xf32>
    %cst_14 = arith.constant dense<0.000000e+00> : vector<8x128xf32>
    %38 = vector.multi_reduction <add>, %37, %cst_14 [0] : vector<1x8x128xf32> to vector<8x128xf32>
    %39 = arith.addf %36, %38 : vector<8x128xf32>
    %c0_15 = arith.constant 0 : index
    %c0_16 = arith.constant 0 : index
    %c0_17 = arith.constant 0 : index
    %40 = vector.load %arg5[%c0_15, %c0_16, %c0_17] : memref<5x8x128xf32, #tpu.memory_space<vmem>>, vector<1x8x128xf32>
    %41 = vector.shape_cast %40 : vector<1x8x128xf32> to vector<8x128xf32>
    %42 = vector.shape_cast %39 : vector<8x128xf32> to vector<1x8x128xf32>
    tpu.vector_store %arg5[%c0_15, %c0_16, %c0_17], %42 {strides = array<i32>} : memref<5x8x128xf32, #tpu.memory_space<vmem>>, vector<1x8x128xf32>,
    %c1 = arith.constant 1 : index
    %c0_18 = arith.constant 0 : index
    %c0_19 = arith.constant 0 : index
    %43 = vector.load %arg5[%c1, %c0_18, %c0_19] : memref<5x8x128xf32, #tpu.memory_space<vmem>>, vector<1x8x128xf32>
    %44 = vector.shape_cast %43 : vector<1x8x128xf32> to vector<8x128xf32>
    %45 = vector.shape_cast %22 : vector<8x128xf32> to vector<1x8x128xf32>
    %cst_20 = arith.constant dense<0.000000e+00> : vector<8x128xf32>
    %46 = vector.multi_reduction <add>, %45, %cst_20 [0] : vector<1x8x128xf32> to vector<8x128xf32>
    %47 = arith.addf %44, %46 : vector<8x128xf32>
    %c1_21 = arith.constant 1 : index
    %c0_22 = arith.constant 0 : index
    %c0_23 = arith.constant 0 : index
    %48 = vector.load %arg5[%c1_21, %c0_22, %c0_23] : memref<5x8x128xf32, #tpu.memory_space<vmem>>, vector<1x8x128xf32>
    %49 = vector.shape_cast %48 : vector<1x8x128xf32> to vector<8x128xf32>
    %50 = vector.shape_cast %47 : vector<8x128xf32> to vector<1x8x128xf32>
    tpu.vector_store %arg5[%c1_21, %c0_22, %c0_23], %50 {strides = array<i32>} : memref<5x8x128xf32, #tpu.memory_space<vmem>>, vector<1x8x128xf32>,
    %c2 = arith.constant 2 : index
    %c0_24 = arith.constant 0 : index
    %c0_25 = arith.constant 0 : index
    %51 = vector.load %arg5[%c2, %c0_24, %c0_25] : memref<5x8x128xf32, #tpu.memory_space<vmem>>, vector<1x8x128xf32>
    %52 = vector.shape_cast %51 : vector<1x8x128xf32> to vector<8x128xf32>
    %53 = vector.shape_cast %23 : vector<8x128xf32> to vector<1x8x128xf32>
    %cst_26 = arith.constant dense<0.000000e+00> : vector<8x128xf32>
    %54 = vector.multi_reduction <add>, %53, %cst_26 [0] : vector<1x8x128xf32> to vector<8x128xf32>
    %55 = arith.addf %52, %54 : vector<8x128xf32>
    %c2_27 = arith.constant 2 : index
    %c0_28 = arith.constant 0 : index
    %c0_29 = arith.constant 0 : index
    %56 = vector.load %arg5[%c2_27, %c0_28, %c0_29] : memref<5x8x128xf32, #tpu.memory_space<vmem>>, vector<1x8x128xf32>
    %57 = vector.shape_cast %56 : vector<1x8x128xf32> to vector<8x128xf32>
    %58 = vector.shape_cast %55 : vector<8x128xf32> to vector<1x8x128xf32>
    tpu.vector_store %arg5[%c2_27, %c0_28, %c0_29], %58 {strides = array<i32>} : memref<5x8x128xf32, #tpu.memory_space<vmem>>, vector<1x8x128xf32>,
    %c3 = arith.constant 3 : index
    %c0_30 = arith.constant 0 : index
    %c0_31 = arith.constant 0 : index
    %59 = vector.load %arg5[%c3, %c0_30, %c0_31] : memref<5x8x128xf32, #tpu.memory_space<vmem>>, vector<1x8x128xf32>
    %60 = vector.shape_cast %59 : vector<1x8x128xf32> to vector<8x128xf32>
    %61 = vector.shape_cast %16 : vector<8x128xf32> to vector<1x8x128xf32>
    %cst_32 = arith.constant dense<0.000000e+00> : vector<8x128xf32>
    %62 = vector.multi_reduction <add>, %61, %cst_32 [0] : vector<1x8x128xf32> to vector<8x128xf32>
    %63 = arith.addf %60, %62 : vector<8x128xf32>
    %c3_33 = arith.constant 3 : index
    %c0_34 = arith.constant 0 : index
    %c0_35 = arith.constant 0 : index
    %64 = vector.load %arg5[%c3_33, %c0_34, %c0_35] : memref<5x8x128xf32, #tpu.memory_space<vmem>>, vector<1x8x128xf32>
    %65 = vector.shape_cast %64 : vector<1x8x128xf32> to vector<8x128xf32>
    %66 = vector.shape_cast %63 : vector<8x128xf32> to vector<1x8x128xf32>
    tpu.vector_store %arg5[%c3_33, %c0_34, %c0_35], %66 {strides = array<i32>} : memref<5x8x128xf32, #tpu.memory_space<vmem>>, vector<1x8x128xf32>,
    %c4 = arith.constant 4 : index
    %c0_36 = arith.constant 0 : index
    %c0_37 = arith.constant 0 : index
    %67 = vector.load %arg5[%c4, %c0_36, %c0_37] : memref<5x8x128xf32, #tpu.memory_space<vmem>>, vector<1x8x128xf32>
    %68 = vector.shape_cast %67 : vector<1x8x128xf32> to vector<8x128xf32>
    %69 = vector.shape_cast %4 : vector<8x128xf32> to vector<1x8x128xf32>
    %cst_38 = arith.constant dense<0.000000e+00> : vector<8x128xf32>
    %70 = vector.multi_reduction <add>, %69, %cst_38 [0] : vector<1x8x128xf32> to vector<8x128xf32>
    %71 = arith.addf %68, %70 : vector<8x128xf32>
    %c4_39 = arith.constant 4 : index
    %c0_40 = arith.constant 0 : index
    %c0_41 = arith.constant 0 : index
    %72 = vector.load %arg5[%c4_39, %c0_40, %c0_41] : memref<5x8x128xf32, #tpu.memory_space<vmem>>, vector<1x8x128xf32>
    %73 = vector.shape_cast %72 : vector<1x8x128xf32> to vector<8x128xf32>
    %74 = vector.shape_cast %71 : vector<8x128xf32> to vector<1x8x128xf32>
    tpu.vector_store %arg5[%c4_39, %c0_40, %c0_41], %74 {strides = array<i32>} : memref<5x8x128xf32, #tpu.memory_space<vmem>>, vector<1x8x128xf32>,
    %c0_i32_42 = arith.constant 0 : i32
    %75 = arith.cmpi eq, %arg1, %c0_i32_42 : i32
    %76 = arith.extui %75 : i1 to i32
    %c0_i32_43 = arith.constant 0 : i32
    %77 = arith.cmpi ne, %76, %c0_i32_43 : i32
    scf.if %77 {
      %c0_44 = arith.constant 0 : index
      %c0_45 = arith.constant 0 : index
      %c0_46 = arith.constant 0 : index
      %78 = vector.load %arg5[%c0_44, %c0_45, %c0_46] : memref<5x8x128xf32, #tpu.memory_space<vmem>>, vector<5x8x128xf32>
      %c0_47 = arith.constant 0 : index
      %c0_48 = arith.constant 0 : index
      %c0_49 = arith.constant 0 : index
      %79 = vector.load %arg4[%c0_47, %c0_48, %c0_49] : memref<5x8x128xf32, #tpu.memory_space<vmem>>, vector<5x8x128xf32>
      tpu.vector_store %arg4[%c0_47, %c0_48, %c0_49], %78 {strides = array<i32>} : memref<5x8x128xf32, #tpu.memory_space<vmem>>, vector<5x8x128xf32>,
    } else {
    }
    return
  }
  func.func @transform_0(%arg0: i32, %arg1: i32) -> (i32, i32) {
    %c1_i32 = arith.constant 1 : i32
    %0 = arith.muli %arg0, %c1_i32 : i32
    %1 = arith.addi %0, %arg1 : i32
    %c0_i32 = arith.constant 0 : i32
    %c0_i32_0 = arith.constant 0 : i32
    return %1, %c0_i32 : i32, i32
  }
  func.func @transform_1(%arg0: i32, %arg1: i32) -> (i32, i32) {
    %c1_i32 = arith.constant 1 : i32
    %0 = arith.muli %arg0, %c1_i32 : i32
    %1 = arith.addi %0, %arg1 : i32
    %c0_i32 = arith.constant 0 : i32
    %c0_i32_0 = arith.constant 0 : i32
    return %1, %c0_i32 : i32, i32
  }
  func.func @transform_2(%arg0: i32, %arg1: i32) -> (i32, i32, i32) {
    %c0_i32 = arith.constant 0 : i32
    %c0_i32_0 = arith.constant 0 : i32
    %c0_i32_1 = arith.constant 0 : i32
    return %arg0, %c0_i32, %c0_i32_0 : i32, i32, i32
  }
}

</mosaic_0001>

<llo_original>
// kernel: tpu_custom_call.1
$region0: #{tpu_custom_call.1}
  #allocation0 [shape = 'u32[]', space=smem, size = 0x4, offset = 0x4, fixed_abs, tag = 'smem constant byte address 0x4 - core index']
  #allocation1 [shape = 'u32[144,128]{1,0:T(1,128)}', space=vmem, size = 0x12000, scoped, tag = 'internal scratch']
  #allocation2 [shape = 'f32[5,8,128]{2,1,0:T(8,128)}', space=vmem, size = 0x5000, scoped, tag = 'scratch operand']
  %s0 = inlined_call_operand.hbm [shape: f32[8,128], index: 0, kind: input, shape index: {}]
  %s1 = inlined_call_operand.hbm [shape: f32[8,128], index: 1, kind: input, shape index: {}]
  %s2 = inlined_call_operand.hbm [shape: f32[5,8,128], index: 2, kind: output, shape index: {}]
  %s3 = sld [smem:[#allocation0]]
  $region34: #{tpu_custom_call.1} parent=0
    _
  %s5 = ssub.s32 1, %s3
  %s6 = scalar_select 0, %s5, %s3
  $region1: #{tpu_custom_call.1} parent=0
    #allocation3 [shape = 'u8[4096]{0}', space=vmem, size = 0x1000, scoped, tag = 'input window, operand 0, single buffered']
    #allocation4 [shape = 's32[1]{0}', space=sflag, size = 0x4, scoped, tag = 'scoped memory for tpu_custom_call.1']
    #allocation5 [shape = 's32[1]{0}', space=sflag, size = 0x4, scoped, tag = 'scoped memory for tpu_custom_call.1']
    #allocation6 [shape = 'u8[4096]{0}', space=vmem, size = 0x1000, scoped, tag = 'input window, operand 1, single buffered']
    #allocation7 [shape = 's32[1]{0}', space=sflag, size = 0x4, scoped, tag = 'scoped memory for tpu_custom_call.1']
    #allocation8 [shape = 'u8[20480]{0}', space=vmem, size = 0x5000, scoped, tag = 'output window, operand 0, single buffered']
    %7 = vsyncpa [#allocation4], 0
    %8 = vsyncpa [#allocation7], 0
    %9 = vsyncpa [#allocation5], 0
    // Predicated region
    $region2: #{tpu_custom_call.1} parent=1 // pred_check
      _
    $region3: #{tpu_custom_call.1} parent=1 // pred_check_branch
      %11 = sbr.rel (0) target = $region5
    $region4: #{tpu_custom_call.1} parent=1 // pred_region
      %s12 = sadd.s32 0, 0
      %s14 = ssub.s32 128, 128
      %15 = vsyncadd [#allocation4], %s14
      %s16 = smul.addr %s12, 128
      %s17 = scalar_lea.hbm %s0, %s16
      %s19 = sshll.u32 [#allocation3], 4
      %s20 = int_to_ptr.vmem [resolvable:$true] %s19
      %22 = dma.hbm_to_vmem [thread:$0]  %s17, 128, %s20, [#allocation4]
    $region5: #{tpu_custom_call.1} parent=1 // pred_fallthru
      _
    // Predicated region
    $region6: #{tpu_custom_call.1} parent=1 // pred_check
      _
    $region7: #{tpu_custom_call.1} parent=1 // pred_check_branch
      %24 = sbr.rel (0) target = $region9
    $region8: #{tpu_custom_call.1} parent=1 // pred_region
      %s25 = sadd.s32 0, 0
      %s27 = ssub.s32 128, 128
      %28 = vsyncadd [#allocation7], %s27
      %s29 = smul.addr %s25, 128
      %s30 = scalar_lea.hbm %s1, %s29
      %s32 = sshll.u32 [#allocation6], 4
      %s33 = int_to_ptr.vmem [resolvable:$true] %s32
      %35 = dma.hbm_to_vmem [thread:$0]  %s30, 128, %s33, [#allocation7]
    $region9: #{tpu_custom_call.1} parent=1 // pred_fallthru
      _
    // Predicated region
    $region10: #{tpu_custom_call.1} parent=1 // pred_check
      _
    $region11: #{tpu_custom_call.1} parent=1 // pred_check_branch
      %37 = sbr.rel (0) target = $region13
    $region12: #{tpu_custom_call.1} parent=1 // pred_region
      %38 = dma.done [#allocation4], 128
    $region13: #{tpu_custom_call.1} parent=1 // pred_fallthru
      _
    // Predicated region
    $region14: #{tpu_custom_call.1} parent=1 // pred_check
      _
    $region15: #{tpu_custom_call.1} parent=1 // pred_check_branch
      %40 = sbr.rel (0) target = $region17
    $region16: #{tpu_custom_call.1} parent=1 // pred_region
      %41 = dma.done [#allocation7], 128
    $region17: #{tpu_custom_call.1} parent=1 // pred_fallthru
      _
    %s42 = sadd.s32 0, 0
    %s43 = sadd.s32 0, 0
    %p44 = scmp.eq.s32.totalorder 0, 0
    // Predicated region
    $region18: #{tpu_custom_call.1} parent=1 // pred_check
      %p45 = pneg %p44
    $region19: #{tpu_custom_call.1} parent=1 // pred_check_branch
      %47 = sbr.rel (%p45) target = $region21
    $region20: #{tpu_custom_call.1} parent=1 // pred_region
      %48 = vst [vmem:[#allocation2] sm:$0xff] 0.0
      %49 = vst [vmem:[#allocation2 + $0x8] sm:$0xff] 0.0
      %50 = vst [vmem:[#allocation2 + $0x10] sm:$0xff] 0.0
      %51 = vst [vmem:[#allocation2 + $0x18] sm:$0xff] 0.0
      %52 = vst [vmem:[#allocation2 + $0x20] sm:$0xff] 0.0
    $region21: #{tpu_custom_call.1} parent=1 // pred_fallthru
      _
    %v53 = vld [vmem:[#allocation3] sm:$0xff]
    %v54 = vld [vmem:[#allocation6] sm:$0xff]
    %v55 = vand.u32 2147483647, %v53
    %v56 = vsub.f32 0.0, %v55
    %v57 = vmul.f32 %v56, 1.442695
    %v58 = vpow.pop %v57
    %v59 = vadd.f32 %v58, 1.0
    %v60 = vrcp.pop %v59
    %v61 = vmul.f32 1.0, %v60
    %vm62 = vcmp.ge.f32.partialorder %v53, 0.0
    %v63 = vmul.f32 %v58, %v61
    %v64 = vsel %vm62, %v61, %v63
    %v65 = vmax.f32 %v53, 0.0
    %v66 = vmul.f32 %v53, %v54
    %v67 = vsub.f32 %v65, %v66
    %v68 = vadd.f32 %v58, 1.0
    %v69 = vlog2.pop %v68
    %v70 = vmul.f32 %v69, 0.6931472
    %v71 = vmul.f32 -0.5, %v58
    %v72 = vadd.f32 %v71, 1.0
    %v73 = vmul.f32 %v72, %v58
    %v74 = vand.u32 2147483647, %v58
    %vm75 = vcmp.lt.f32.partialorder %v74, 0.0004427343
    %v76 = vsel %vm75, %v73, %v70
    %v77 = vadd.f32 %v67, %v76
    %v78 = vmul.f32 %v64, %v54
    %v79 = vadd.f32 %v64, %v54
    %v80 = vmul.f32 %v78, 2.0
    %v81 = vsub.f32 %v79, %v80
    %v82 = vmul.f32 %v81, %v81
    %v83 = vmul.f32 %v54, -0.5
    %v84 = vadd.f32 %v83, 0.75
    %v85 = vmul.f32 %v84, %v82
    %v86 = vmul.f32 %v85, %v77
    %v87 = vld [vmem:[#allocation2] sm:$0xff]
    %v88 = vadd.f32 %v86, 0.0
    %v89 = vadd.f32 %v87, %v88
    %90 = vst [vmem:[#allocation2] sm:$0xff] %v89
    %s91 = scalar_lea.vmem [#allocation2], 8
    %v92 = vld [vmem:[%s91] sm:$0xff]
    %v93 = vadd.f32 %v77, 0.0
    %v94 = vadd.f32 %v92, %v93
    %95 = vst [vmem:[%s91] sm:$0xff] %v94
    %s96 = scalar_lea.vmem [#allocation2], 16
    %v97 = vld [vmem:[%s96] sm:$0xff]
    %v98 = vadd.f32 %v78, 0.0
    %v99 = vadd.f32 %v97, %v98
    %100 = vst [vmem:[%s96] sm:$0xff] %v99
    %s101 = scalar_lea.vmem [#allocation2], 24
    %v102 = vld [vmem:[%s101] sm:$0xff]
    %v103 = vadd.f32 %v64, 0.0
    %v104 = vadd.f32 %v102, %v103
    %105 = vst [vmem:[%s101] sm:$0xff] %v104
    %s106 = scalar_lea.vmem [#allocation2], 32
    %v107 = vld [vmem:[%s106] sm:$0xff]
    %v108 = vadd.f32 %v54, 0.0
    %v109 = vadd.f32 %v107, %v108
    %110 = vst [vmem:[%s106] sm:$0xff] %v109
    // Predicated region
    $region22: #{tpu_custom_call.1} parent=1 // pred_check
      %p111 = pneg %p44
    $region23: #{tpu_custom_call.1} parent=1 // pred_check_branch
      %113 = sbr.rel (%p111) target = $region25
    $region24: #{tpu_custom_call.1} parent=1 // pred_region
      %v114 = vld [vmem:[#allocation2] sm:$0xff]
      %v115 = vld [vmem:[#allocation2 + $0x8] sm:$0xff]
      %v116 = vld [vmem:[#allocation2 + $0x10] sm:$0xff]
      %v117 = vld [vmem:[#allocation2 + $0x18] sm:$0xff]
      %v118 = vld [vmem:[#allocation2 + $0x20] sm:$0xff]
      %119 = vst [vmem:[#allocation8] sm:$0xff] %v114
      %120 = vst [vmem:[#allocation8 + $0x8] sm:$0xff] %v115
      %121 = vst [vmem:[#allocation8 + $0x10] sm:$0xff] %v116
      %122 = vst [vmem:[#allocation8 + $0x18] sm:$0xff] %v117
      %123 = vst [vmem:[#allocation8 + $0x20] sm:$0xff] %v118
    $region25: #{tpu_custom_call.1} parent=1 // pred_fallthru
      _
    // Predicated region
    $region26: #{tpu_custom_call.1} parent=1 // pred_check
      _
    $region27: #{tpu_custom_call.1} parent=1 // pred_check_branch
      %125 = sbr.rel (0) target = $region29
    $region28: #{tpu_custom_call.1} parent=1 // pred_region
      %s127 = ssub.s32 640, 640
      %128 = vsyncadd [#allocation5], %s127
      %s129 = sshll.u32 [#allocation8], 4
      %s130 = int_to_ptr.vmem [resolvable:$true] %s129
      %135 = dma.vmem_to_hbm [thread:$0]  %s130, 640, %s2, [#allocation5], 128, 128, 8
    $region29: #{tpu_custom_call.1} parent=1 // pred_fallthru
      _
    // Predicated region
    $region30: #{tpu_custom_call.1} parent=1 // pred_check
      _
    $region31: #{tpu_custom_call.1} parent=1 // pred_check_branch
      %137 = sbr.rel (0) target = $region33
    $region32: #{tpu_custom_call.1} parent=1 // pred_region
      %138 = dma.done [#allocation5], 640
    $region33: #{tpu_custom_call.1} parent=1 // pred_fallthru
      _
    %139 = vsyncpa [#allocation4], 1
    %140 = vsyncpa [#allocation7], 1
    %141 = vsyncpa [#allocation5], 1

</llo_original>
